<compile_context>
chip_gen: v6e
topology: v6e:2x2x1
jax: 0.10.0
libtpu: 0.0.40
codegen_flags: <defaults>
</compile_context>

<pallas_src>
import jax
import jax.numpy as jnp
import numpy as np
from jax import lax
from jax.experimental import pallas as pl
from jax.experimental.pallas import tpu as pltpu

EPS = 1e-5


def _basic_block_kernel(col_ref, x_ref, w1_ref, w2_ref, w3_ref,
                        b1_ref, b2_ref, b3_ref, out_ref):
    # col_ref : (1, 9*Cin, TM)   bf16  transposed im2col slab (tap-major channels)
    # x_ref   : (1, Cin,  TM)    bf16  original input pixels (for identity branch)
    # w1_ref  : (Cin, 9*Cin)     bf16  conv1 weights with bn1 scale folded in
    # w2_ref  : (Cout, Cin)      bf16  conv2 weights with bn2 scale folded in
    # w3_ref  : (Cout, Cin)      bf16  conv3 weights with bn3 scale folded in
    # b*_ref  : (C, 1)           f32   folded BN biases
    # out_ref : (1, Cout, TM)    f32
    col = col_ref[0]                                    # (9*Cin, TM)
    x = x_ref[0]                                        # (Cin,  TM)

    # conv1 (3x3 as a single K=9*Cin matmul) + bn1 bias + relu
    acc1 = jnp.dot(w1_ref[...], col, preferred_element_type=jnp.float32)   # (Cin, TM)
    out1 = jnp.maximum(acc1 + b1_ref[...], 0.0).astype(jnp.bfloat16)

    # identity branch: conv3 (1x1) + bn3 bias + relu
    idn = jnp.dot(w3_ref[...], x, preferred_element_type=jnp.float32)      # (Cout, TM)
    idn = jnp.maximum(idn + b3_ref[...], 0.0)

    # conv2 (1x1) + bn2 bias + relu
    out2 = jnp.dot(w2_ref[...], out1, preferred_element_type=jnp.float32)  # (Cout, TM)
    out2 = jnp.maximum(out2 + b2_ref[...], 0.0)

    # residual add + relu
    out_ref[0] = jnp.maximum(out2 + idn, 0.0).astype(out_ref.dtype)


def basic_block_pallas(x_nchw, params, *, tile_hw=None):
    """x_nchw: (N, Cin, H, W) float32. Returns (N, Cout, H, W) float32."""
    N, Cin, H, W = x_nchw.shape
    Cout = params["w2"].shape[0]            # OIHW: (Cout, Cin, 1, 1)
    HW = H * W
    K9 = 9 * Cin

    # Spatial tile along the flattened H*W (lane) axis.
    if tile_hw is None:
        tile_hw = 128 if (HW % 128 == 0) else HW
    assert HW % tile_hw == 0, "tile_hw must divide H*W"
    num_t = HW // tile_hw

    x = x_nchw.astype(jnp.float32)

    # ---- wrapper-side layout prep (glue, runs once in XLA, not in the hot loop) ----
    # Transposed im2col: colT[n, tap*Cin + c, h*W + w] = xpad[n, c, h+dh, w+dw]
    xp = jnp.pad(x, ((0, 0), (0, 0), (1, 1), (1, 1)))
    taps = [xp[:, :, dh:dh + H, dw:dw + W] for dh in range(3) for dw in range(3)]
    colT = jnp.concatenate(taps, axis=1).reshape(N, K9, HW).astype(jnp.bfloat16)
    xT = x.reshape(N, Cin, HW).astype(jnp.bfloat16)

    # Fold BatchNorm (eval) into per-output-channel scale/bias; scale goes into weights.
    def fold_bn(gamma, beta, mean, var):
        scale = gamma / jnp.sqrt(var + EPS)
        bias = beta - mean * scale
        return scale, bias

    s1, b1 = fold_bn(*params["bn1"])
    s2, b2 = fold_bn(*params["bn2"])
    s3, b3 = fold_bn(*params["bn3"])

    # conv1: OIHW (Cin,Cin,3,3) -> (Cin_out, 9*Cin) matching colT's tap-major channels.
    w1T = (params["w1"].transpose(0, 2, 3, 1).reshape(Cin, K9) * s1[:, None]).astype(jnp.bfloat16)
    w2T = (params["w2"][:, :, 0, 0] * s2[:, None]).astype(jnp.bfloat16)   # (Cout, Cin)
    w3T = (params["w3"][:, :, 0, 0] * s3[:, None]).astype(jnp.bfloat16)   # (Cout, Cin)

    b1c = b1.reshape(Cin, 1).astype(jnp.float32)
    b2c = b2.reshape(Cout, 1).astype(jnp.float32)
    b3c = b3.reshape(Cout, 1).astype(jnp.float32)

    out_flat = pl.pallas_call(
        _basic_block_kernel,
        out_shape=jax.ShapeDtypeStruct((N, Cout, HW), jnp.float32),
        grid_spec=pltpu.PrefetchScalarGridSpec(
            num_scalar_prefetch=0,
            grid=(N, num_t),
            in_specs=[
                pl.BlockSpec((1, K9, tile_hw), lambda n, t: (n, 0, t)),    # colT
                pl.BlockSpec((1, Cin, tile_hw), lambda n, t: (n, 0, t)),   # xT
                pl.BlockSpec((Cin, K9), lambda n, t: (0, 0)),              # w1T
                pl.BlockSpec((Cout, Cin), lambda n, t: (0, 0)),            # w2T
                pl.BlockSpec((Cout, Cin), lambda n, t: (0, 0)),            # w3T
                pl.BlockSpec((Cin, 1), lambda n, t: (0, 0)),               # b1
                pl.BlockSpec((Cout, 1), lambda n, t: (0, 0)),              # b2
                pl.BlockSpec((Cout, 1), lambda n, t: (0, 0)),              # b3
            ],
            out_specs=pl.BlockSpec((1, Cout, tile_hw), lambda n, t: (n, 0, t)),
        ),
        compiler_params=pltpu.CompilerParams(
            dimension_semantics=("parallel", "parallel"),
            vmem_limit_bytes=32 * 1024 * 1024,
        ),
    )(colT, xT, w1T, w2T, w3T, b1c, b2c, b3c)

    # Output is already channels-first; just un-flatten the spatial axis.
    return out_flat.reshape(N, Cout, H, W)


# ---------------------- pure-JAX reference (NCHW, like PyTorch, f32) ----------------------
def _bn_eval(x, gamma, beta, mean, var):
    g = gamma.reshape(1, -1, 1, 1)
    b = beta.reshape(1, -1, 1, 1)
    m = mean.reshape(1, -1, 1, 1)
    v = var.reshape(1, -1, 1, 1)
    return (x - m) / jnp.sqrt(v + EPS) * g + b


def basic_block_ref(x, params):
    dn = ("NCHW", "OIHW", "NCHW")
    relu = lambda t: jnp.maximum(t, 0.0)

    identity = lax.conv_general_dilated(x, params["w3"], (1, 1), "VALID",
                                        dimension_numbers=dn)
    identity = relu(_bn_eval(identity, *params["bn3"]))

    out = lax.conv_general_dilated(x, params["w1"], (1, 1), ((1, 1), (1, 1)),
                                   dimension_numbers=dn)
    out = relu(_bn_eval(out, *params["bn1"]))
    out = lax.conv_general_dilated(out, params["w2"], (1, 1), "VALID",
                                   dimension_numbers=dn)
    out = relu(_bn_eval(out, *params["bn2"]))
    return relu(out + identity)


# ---------------------- deterministic parameter init ----------------------
def init_params(key, cin, cout):
    ks = jax.random.split(key, 6)

    def bn(k, c):
        kg, kb, km, kv = jax.random.split(k, 4)
        gamma = 1.0 + 0.1 * jax.random.normal(kg, (c,), jnp.float32)
        beta = 0.1 * jax.random.normal(kb, (c,), jnp.float32)
        mean = 0.1 * jax.random.normal(km, (c,), jnp.float32)
        var = jax.random.uniform(kv, (c,), jnp.float32, 0.5, 1.5)
        return (gamma, beta, mean, var)

    return {
        "w1": 0.1 * jax.random.normal(ks[0], (cin, cin, 3, 3), jnp.float32),   # OIHW
        "w2": 0.1 * jax.random.normal(ks[1], (cout, cin, 1, 1), jnp.float32),  # OIHW
        "w3": 0.1 * jax.random.normal(ks[2], (cout, cin, 1, 1), jnp.float32),  # OIHW
        "bn1": bn(ks[3], cin),
        "bn2": bn(ks[4], cout),
        "bn3": bn(ks[5], cout),
    }


if __name__ == "__main__":
    N, Cin, Cout, H, W = 2, 8, 16, 16, 16
    key = jax.random.PRNGKey(0)
    kx, kp = jax.random.split(key)
    x = jax.random.normal(kx, (N, Cin, H, W), jnp.float32)
    params = init_params(kp, Cin, Cout)

    out = jax.block_until_ready(basic_block_pallas(x, params))
    ref = jax.block_until_ready(basic_block_ref(x, params))

    # bf16 matmul operands with f32 accumulation -> compare at bf16-level tolerance.
    np.testing.assert_allclose(np.asarray(out), np.asarray(ref), rtol=2e-2, atol=2e-2)
    print("KERNEL_OK")
</pallas_src>

<mosaic_0001>
module attributes {stable_mosaic.version = 11 : i64} {
  func.func @_basic_block_kernel(%arg0: i32, %arg1: i32, %arg2: memref<1x72x128xbf16, #tpu.memory_space<vmem>>, %arg3: memref<1x8x128xbf16, #tpu.memory_space<vmem>>, %arg4: memref<8x72xbf16, #tpu.memory_space<vmem>>, %arg5: memref<16x8xbf16, #tpu.memory_space<vmem>>, %arg6: memref<16x8xbf16, #tpu.memory_space<vmem>>, %arg7: memref<8x1xf32, #tpu.memory_space<vmem>>, %arg8: memref<16x1xf32, #tpu.memory_space<vmem>>, %arg9: memref<16x1xf32, #tpu.memory_space<vmem>>, %arg10: memref<1x16x128xf32, #tpu.memory_space<vmem>>) attributes {dimension_semantics = [#tpu.dimension_semantics<parallel>, #tpu.dimension_semantics<parallel>], iteration_bounds = array<i64: 2, 2>, scalar_prefetch = 0 : i64, scratch_operands = 0 : i64, tpu.core_type = #tpu.core_type<tc>, window_params = [{transform_indices = @transform_0, window_bounds = array<i64: 1, 72, 128>}, {transform_indices = @transform_1, window_bounds = array<i64: 1, 8, 128>}, {pipeline_mode = #tpu.pipeline_mode<synchronous>, transform_indices = @transform_2, window_bounds = array<i64: 8, 72>}, {pipeline_mode = #tpu.pipeline_mode<synchronous>, transform_indices = @transform_3, window_bounds = array<i64: 16, 8>}, {pipeline_mode = #tpu.pipeline_mode<synchronous>, transform_indices = @transform_4, window_bounds = array<i64: 16, 8>}, {pipeline_mode = #tpu.pipeline_mode<synchronous>, transform_indices = @transform_5, window_bounds = array<i64: 8, 1>}, {pipeline_mode = #tpu.pipeline_mode<synchronous>, transform_indices = @transform_6, window_bounds = array<i64: 16, 1>}, {pipeline_mode = #tpu.pipeline_mode<synchronous>, transform_indices = @transform_7, window_bounds = array<i64: 16, 1>}, {transform_indices = @transform_8, window_bounds = array<i64: 1, 16, 128>}]} {
    %c0 = arith.constant 0 : index
    %c0_0 = arith.constant 0 : index
    %c0_1 = arith.constant 0 : index
    %0 = vector.load %arg2[%c0, %c0_0, %c0_1] : memref<1x72x128xbf16, #tpu.memory_space<vmem>>, vector<1x72x128xbf16>
    %1 = vector.shape_cast %0 : vector<1x72x128xbf16> to vector<72x128xbf16>
    %c0_2 = arith.constant 0 : index
    %c0_3 = arith.constant 0 : index
    %c0_4 = arith.constant 0 : index
    %2 = vector.load %arg3[%c0_2, %c0_3, %c0_4] : memref<1x8x128xbf16, #tpu.memory_space<vmem>>, vector<1x8x128xbf16>
    %3 = vector.shape_cast %2 : vector<1x8x128xbf16> to vector<8x128xbf16>
    %c0_5 = arith.constant 0 : index
    %c0_6 = arith.constant 0 : index
    %4 = vector.load %arg4[%c0_5, %c0_6] : memref<8x72xbf16, #tpu.memory_space<vmem>>, vector<8x72xbf16>
    %cst = arith.constant dense<0.000000e+00> : vector<8x128xf32>
    %5 = tpu.matmul %4, %1, %cst {dimension_numbers = #tpu.dot_dimension_numbers<[1], [0], [0], [1], [0, 0, 1, 1], [], []>} : vector<8x72xbf16>, vector<72x128xbf16>, vector<8x128xf32> -> vector<8x128xf32>
    %c0_7 = arith.constant 0 : index
    %c0_8 = arith.constant 0 : index
    %6 = vector.load %arg7[%c0_7, %c0_8] : memref<8x1xf32, #tpu.memory_space<vmem>>, vector<8x1xf32>
    %7 = vector.broadcast %6 : vector<8x1xf32> to vector<8x128xf32>
    %8 = arith.addf %5, %7 : vector<8x128xf32>
    %cst_9 = arith.constant 0.000000e+00 : f32
    %9 = vector.broadcast %cst_9 : f32 to vector<8x128xf32>
    %10 = arith.maximumf %8, %9 : vector<8x128xf32>
    %11 = arith.truncf %10 : vector<8x128xf32> to vector<8x128xbf16>
    %c0_10 = arith.constant 0 : index
    %c0_11 = arith.constant 0 : index
    %12 = vector.load %arg6[%c0_10, %c0_11] : memref<16x8xbf16, #tpu.memory_space<vmem>>, vector<16x8xbf16>
    %cst_12 = arith.constant dense<0.000000e+00> : vector<16x128xf32>
    %13 = tpu.matmul %12, %3, %cst_12 {dimension_numbers = #tpu.dot_dimension_numbers<[1], [0], [0], [1], [0, 0, 1, 1], [], []>} : vector<16x8xbf16>, vector<8x128xbf16>, vector<16x128xf32> -> vector<16x128xf32>
    %c0_13 = arith.constant 0 : index
    %c0_14 = arith.constant 0 : index
    %14 = vector.load %arg9[%c0_13, %c0_14] : memref<16x1xf32, #tpu.memory_space<vmem>>, vector<16x1xf32>
    %15 = vector.broadcast %14 : vector<16x1xf32> to vector<16x128xf32>
    %16 = arith.addf %13, %15 : vector<16x128xf32>
    %cst_15 = arith.constant 0.000000e+00 : f32
    %17 = vector.broadcast %cst_15 : f32 to vector<16x128xf32>
    %18 = arith.maximumf %16, %17 : vector<16x128xf32>
    %c0_16 = arith.constant 0 : index
    %c0_17 = arith.constant 0 : index
    %19 = vector.load %arg5[%c0_16, %c0_17] : memref<16x8xbf16, #tpu.memory_space<vmem>>, vector<16x8xbf16>
    %cst_18 = arith.constant dense<0.000000e+00> : vector<16x128xf32>
    %20 = tpu.matmul %19, %11, %cst_18 {dimension_numbers = #tpu.dot_dimension_numbers<[1], [0], [0], [1], [0, 0, 1, 1], [], []>} : vector<16x8xbf16>, vector<8x128xbf16>, vector<16x128xf32> -> vector<16x128xf32>
    %c0_19 = arith.constant 0 : index
    %c0_20 = arith.constant 0 : index
    %21 = vector.load %arg8[%c0_19, %c0_20] : memref<16x1xf32, #tpu.memory_space<vmem>>, vector<16x1xf32>
    %22 = vector.broadcast %21 : vector<16x1xf32> to vector<16x128xf32>
    %23 = arith.addf %20, %22 : vector<16x128xf32>
    %cst_21 = arith.constant 0.000000e+00 : f32
    %24 = vector.broadcast %cst_21 : f32 to vector<16x128xf32>
    %25 = arith.maximumf %23, %24 : vector<16x128xf32>
    %26 = arith.addf %25, %18 : vector<16x128xf32>
    %cst_22 = arith.constant 0.000000e+00 : f32
    %27 = vector.broadcast %cst_22 : f32 to vector<16x128xf32>
    %28 = arith.maximumf %26, %27 : vector<16x128xf32>
    %c0_23 = arith.constant 0 : index
    %c0_24 = arith.constant 0 : index
    %c0_25 = arith.constant 0 : index
    %29 = vector.load %arg10[%c0_23, %c0_24, %c0_25] : memref<1x16x128xf32, #tpu.memory_space<vmem>>, vector<1x16x128xf32>
    %30 = vector.shape_cast %29 : vector<1x16x128xf32> to vector<16x128xf32>
    %31 = vector.shape_cast %28 : vector<16x128xf32> to vector<1x16x128xf32>
    tpu.vector_store %arg10[%c0_23, %c0_24, %c0_25], %31 {strides = array<i32>} : memref<1x16x128xf32, #tpu.memory_space<vmem>>, vector<1x16x128xf32>,
    return
  }
  func.func @transform_0(%arg0: i32, %arg1: i32) -> (i32, i32, i32) {
    %c0_i32 = arith.constant 0 : i32
    %c0_i32_0 = arith.constant 0 : i32
    return %arg0, %c0_i32, %arg1 : i32, i32, i32
  }
  func.func @transform_1(%arg0: i32, %arg1: i32) -> (i32, i32, i32) {
    %c0_i32 = arith.constant 0 : i32
    %c0_i32_0 = arith.constant 0 : i32
    return %arg0, %c0_i32, %arg1 : i32, i32, i32
  }
  func.func @transform_2(%arg0: i32, %arg1: i32) -> (i32, i32) {
    %c0_i32 = arith.constant 0 : i32
    %c0_i32_0 = arith.constant 0 : i32
    %c0_i32_1 = arith.constant 0 : i32
    return %c0_i32, %c0_i32_0 : i32, i32
  }
  func.func @transform_3(%arg0: i32, %arg1: i32) -> (i32, i32) {
    %c0_i32 = arith.constant 0 : i32
    %c0_i32_0 = arith.constant 0 : i32
    %c0_i32_1 = arith.constant 0 : i32
    return %c0_i32, %c0_i32_0 : i32, i32
  }
  func.func @transform_4(%arg0: i32, %arg1: i32) -> (i32, i32) {
    %c0_i32 = arith.constant 0 : i32
    %c0_i32_0 = arith.constant 0 : i32
    %c0_i32_1 = arith.constant 0 : i32
    return %c0_i32, %c0_i32_0 : i32, i32
  }
  func.func @transform_5(%arg0: i32, %arg1: i32) -> (i32, i32) {
    %c0_i32 = arith.constant 0 : i32
    %c0_i32_0 = arith.constant 0 : i32
    %c0_i32_1 = arith.constant 0 : i32
    return %c0_i32, %c0_i32_0 : i32, i32
  }
  func.func @transform_6(%arg0: i32, %arg1: i32) -> (i32, i32) {
    %c0_i32 = arith.constant 0 : i32
    %c0_i32_0 = arith.constant 0 : i32
    %c0_i32_1 = arith.constant 0 : i32
    return %c0_i32, %c0_i32_0 : i32, i32
  }
  func.func @transform_7(%arg0: i32, %arg1: i32) -> (i32, i32) {
    %c0_i32 = arith.constant 0 : i32
    %c0_i32_0 = arith.constant 0 : i32
    %c0_i32_1 = arith.constant 0 : i32
    return %c0_i32, %c0_i32_0 : i32, i32
  }
  func.func @transform_8(%arg0: i32, %arg1: i32) -> (i32, i32, i32) {
    %c0_i32 = arith.constant 0 : i32
    %c0_i32_0 = arith.constant 0 : i32
    return %arg0, %c0_i32, %arg1 : i32, i32, i32
  }
}

</mosaic_0001>

<llo_original>
// kernel: tpu_custom_call.1
$region0: #{tpu_custom_call.1}
  #allocation0 [shape = 'u32[]', space=smem, size = 0x4, offset = 0x4, fixed_abs, tag = 'smem constant byte address 0x4 - core index']
  #allocation1 [shape = 'u32[144,128]{1,0:T(1,128)}', space=vmem, size = 0x12000, scoped, tag = 'internal scratch']
  %s0 = inlined_call_operand.hbm [shape: bf16[2,72,256], index: 0, kind: input, shape index: {}]
  %s1 = inlined_call_operand.vmem [shape: bf16[2,8,256], index: 1, kind: input, shape index: {}]
  %s2 = inlined_call_operand.vmem [shape: bf16[8,72], index: 2, kind: input, shape index: {}]
  %s3 = inlined_call_operand.vmem [shape: bf16[16,8], index: 3, kind: input, shape index: {}]
  %s4 = inlined_call_operand.vmem [shape: bf16[16,8], index: 4, kind: input, shape index: {}]
  %s5 = inlined_call_operand.vmem [shape: f32[8,1], index: 5, kind: input, shape index: {}]
  %s6 = inlined_call_operand.vmem [shape: f32[16,1], index: 6, kind: input, shape index: {}]
  %s7 = inlined_call_operand.vmem [shape: f32[16,1], index: 7, kind: input, shape index: {}]
  %s8 = inlined_call_operand.hbm [shape: f32[2,16,256], index: 8, kind: output, shape index: {}]
  %s9 = sld [smem:[#allocation0]]
  $region69: #{tpu_custom_call.1} parent=0
    _
  %s11 = ssub.s32 1, %s9
  %s12 = scalar_select 0, %s11, %s9
  $region1: #{tpu_custom_call.1} parent=0
    #allocation2 [shape = 'u8[36864]{0}', space=vmem, size = 0x9000, scoped, tag = 'input window, operand 0']
    #allocation3 [shape = 's32[2]{0}', space=sflag, size = 0x8, scoped, tag = 'scoped memory for tpu_custom_call.1']
    #allocation4 [shape = 's32[2]{0}', space=sflag, size = 0x8, scoped, tag = 'scoped memory for tpu_custom_call.1']
    #allocation5 [shape = 'u8[16384]{0}', space=vmem, size = 0x4000, scoped, tag = 'output window, operand 0']
    %13 = vsyncpa [#allocation3], 0
    %s14 = scalar_lea.sflag [#allocation3], 1
    %15 = vsyncpa %s14, 0
    %16 = vsyncpa [#allocation4], 0
    %s17 = scalar_lea.sflag [#allocation4], 1
    %18 = vsyncpa %s17, 0
    loop: start=0, step=1, limit=6
    $region2: #{tpu_custom_call.1} parent=1 // loop_pre_header
      _
    $region3: #{tpu_custom_call.1} parent=1 // loop_header
      %s20 = sphi 0, %s24
      %p21 = scmp.ge.s32.totalorder %s20, 6
      %s27 = sphi 0, %s39
      %s28 = sphi 0, %s35
      %s29 = sphi 0, %s27
      %s30 = sphi 0, %s28
      %s31 = sphi 0, %s29
      %s32 = sphi 0, %s30
      %s44 = sphi 0, %s46
      %s47 = sphi 0, %s44
      %s48 = sphi 0, %s47
      %s64 = sphi 0, %s48
      %s72 = sphi 0, %s74
      %s75 = sphi 0, %s72
      %s76 = sphi 0, %s75
      %s92 = sphi 0, %s76
      %s96 = sphi 0, %s96
      %s98 = sphi 0, %s96
      %s99 = sphi 0, %s98
      %s113 = sphi 0, %s99
      %s117 = sphi 0, %s117
      %s119 = sphi 0, %s117
      %s120 = sphi 0, %s119
      %s134 = sphi 0, %s120
      %s138 = sphi 0, %s138
      %s140 = sphi 0, %s138
      %s141 = sphi 0, %s140
      %s155 = sphi 0, %s141
      %s159 = sphi 0, %s159
      %s161 = sphi 0, %s159
      %s162 = sphi 0, %s161
      %s176 = sphi 0, %s162
      %s180 = sphi 0, %s180
      %s182 = sphi 0, %s180
      %s183 = sphi 0, %s182
      %s197 = sphi 0, %s183
      %s201 = sphi 0, %s201
      %s203 = sphi 0, %s201
      %s204 = sphi 0, %s203
      %s218 = sphi 0, %s204
      %s226 = sphi 0, %s228
      %s229 = sphi 0, %s226
      %s230 = sphi 0, %s229
      %s246 = sphi 0, %s230
    $region4: #{tpu_custom_call.1} parent=1 // loop_header_branch
      %23 = sbr.rel (%p21) target = $region8
    $region5: #{tpu_custom_call.1} parent=1 // loop_body
      %s25 = ssub.s32 %s20, 1
      %s26 = ssub.s32 %s20, 2
      %s33 = sadd.s32 1, %s28
      %p34 = scmp.ge.s32.totalorder %s33, 2
      %s35 = scalar_select %p34, 0, %s33
      %s36 = sadd.s32 1, %s27
      %s37 = scalar_select %p34, %s36, %s27
      %p38 = scmp.ge.s32.totalorder %s37, 2
      %s39 = scalar_select %p38, 0, %s37
      %s40 = ssub.s32 %s27, %s39
      %s41 = ssub.s32 %s28, %s35
      %s42 = sor.u32 %s40, %s41
      %p43 = scmp.eq.s32.totalorder %s42, 0
      %s45 = sadd.s32 %s44, 1
      %s46 = scalar_select %p43, %s44, %s45
      %p49 = pneg %p43
      %p50 = scmp.eq.s32.totalorder %s20, 3
      %p51 = por %p49, %p50
      %p52 = scmp.ne.s32.totalorder %s44, %s47
      %p53 = scmp.eq.s32.totalorder %s20, 0
      %p54 = por %p52, %p53
      %p55 = scmp.ne.s32.totalorder %s44, %s47
      %p56 = scmp.eq.s32.totalorder %s25, 3
      %p57 = por %p55, %p56
      %p58 = scmp.ne.s32.totalorder %s47, %s48
      %p59 = scmp.eq.s32.totalorder %s25, 0
      %p60 = por %p58, %p59
      %p61 = scmp.ne.s32.totalorder %s47, %s48
      %p62 = scmp.eq.s32.totalorder %s26, 3
      %p63 = por %p61, %p62
      %p65 = scmp.ne.s32.totalorder %s48, %s64
      %p66 = scmp.eq.s32.totalorder %s26, 0
      %p67 = por %p65, %p66
      %s68 = ssub.s32 %s27, %s39
      %s69 = ssub.s32 %s28, %s35
      %s70 = sor.u32 %s68, %s69
      %p71 = scmp.eq.s32.totalorder %s70, 0
      %s73 = sadd.s32 %s72, 1
      %s74 = scalar_select %p71, %s72, %s73
      %p77 = pneg %p71
      %p78 = scmp.eq.s32.totalorder %s20, 3
      %p79 = por %p77, %p78
      %p80 = scmp.ne.s32.totalorder %s72, %s75
      %p81 = scmp.eq.s32.totalorder %s20, 0
      %p82 = por %p80, %p81
      %p83 = scmp.ne.s32.totalorder %s72, %s75
      %p84 = scmp.eq.s32.totalorder %s25, 3
      %p85 = por %p83, %p84
      %p86 = scmp.ne.s32.totalorder %s75, %s76
      %p87 = scmp.eq.s32.totalorder %s25, 0
      %p88 = por %p86, %p87
      %p89 = scmp.ne.s32.totalorder %s75, %s76
      %p90 = scmp.eq.s32.totalorder %s26, 3
      %p91 = por %p89, %p90
      %p93 = scmp.ne.s32.totalorder %s76, %s92
      %p94 = scmp.eq.s32.totalorder %s26, 0
      %p95 = por %p93, %p94
      %s97 = sadd.s32 %s96, 1
      %p100 = scmp.eq.s32.totalorder %s20, 3
      %p101 = scmp.ne.s32.totalorder %s96, %s98
      %p102 = scmp.eq.s32.totalorder %s20, 0
      %p103 = por %p101, %p102
      %p104 = scmp.ne.s32.totalorder %s96, %s98
      %p105 = scmp.eq.s32.totalorder %s25, 3
      %p106 = por %p104, %p105
      %p107 = scmp.ne.s32.totalorder %s98, %s99
      %p108 = scmp.eq.s32.totalorder %s25, 0
      %p109 = por %p107, %p108
      %p110 = scmp.ne.s32.totalorder %s98, %s99
      %p111 = scmp.eq.s32.totalorder %s26, 3
      %p112 = por %p110, %p111
      %p114 = scmp.ne.s32.totalorder %s99, %s113
      %p115 = scmp.eq.s32.totalorder %s26, 0
      %p116 = por %p114, %p115
      %s118 = sadd.s32 %s117, 1
      %p121 = scmp.eq.s32.totalorder %s20, 3
      %p122 = scmp.ne.s32.totalorder %s117, %s119
      %p123 = scmp.eq.s32.totalorder %s20, 0
      %p124 = por %p122, %p123
      %p125 = scmp.ne.s32.totalorder %s117, %s119
      %p126 = scmp.eq.s32.totalorder %s25, 3
      %p127 = por %p125, %p126
      %p128 = scmp.ne.s32.totalorder %s119, %s120
      %p129 = scmp.eq.s32.totalorder %s25, 0
      %p130 = por %p128, %p129
      %p131 = scmp.ne.s32.totalorder %s119, %s120
      %p132 = scmp.eq.s32.totalorder %s26, 3
      %p133 = por %p131, %p132
      %p135 = scmp.ne.s32.totalorder %s120, %s134
      %p136 = scmp.eq.s32.totalorder %s26, 0
      %p137 = por %p135, %p136
      %s139 = sadd.s32 %s138, 1
      %p142 = scmp.eq.s32.totalorder %s20, 3
      %p143 = scmp.ne.s32.totalorder %s138, %s140
      %p144 = scmp.eq.s32.totalorder %s20, 0
      %p145 = por %p143, %p144
      %p146 = scmp.ne.s32.totalorder %s138, %s140
      %p147 = scmp.eq.s32.totalorder %s25, 3
      %p148 = por %p146, %p147
      %p149 = scmp.ne.s32.totalorder %s140, %s141
      %p150 = scmp.eq.s32.totalorder %s25, 0
      %p151 = por %p149, %p150
      %p152 = scmp.ne.s32.totalorder %s140, %s141
      %p153 = scmp.eq.s32.totalorder %s26, 3
      %p154 = por %p152, %p153
      %p156 = scmp.ne.s32.totalorder %s141, %s155
      %p157 = scmp.eq.s32.totalorder %s26, 0
      %p158 = por %p156, %p157
      %s160 = sadd.s32 %s159, 1
      %p163 = scmp.eq.s32.totalorder %s20, 3
      %p164 = scmp.ne.s32.totalorder %s159, %s161
      %p165 = scmp.eq.s32.totalorder %s20, 0
      %p166 = por %p164, %p165
      %p167 = scmp.ne.s32.totalorder %s159, %s161
      %p168 = scmp.eq.s32.totalorder %s25, 3
      %p169 = por %p167, %p168
      %p170 = scmp.ne.s32.totalorder %s161, %s162
      %p171 = scmp.eq.s32.totalorder %s25, 0
      %p172 = por %p170, %p171
      %p173 = scmp.ne.s32.totalorder %s161, %s162
      %p174 = scmp.eq.s32.totalorder %s26, 3
      %p175 = por %p173, %p174
      %p177 = scmp.ne.s32.totalorder %s162, %s176
      %p178 = scmp.eq.s32.totalorder %s26, 0
      %p179 = por %p177, %p178
      %s181 = sadd.s32 %s180, 1
      %p184 = scmp.eq.s32.totalorder %s20, 3
      %p185 = scmp.ne.s32.totalorder %s180, %s182
      %p186 = scmp.eq.s32.totalorder %s20, 0
      %p187 = por %p185, %p186
      %p188 = scmp.ne.s32.totalorder %s180, %s182
      %p189 = scmp.eq.s32.totalorder %s25, 3
      %p190 = por %p188, %p189
      %p191 = scmp.ne.s32.totalorder %s182, %s183
      %p192 = scmp.eq.s32.totalorder %s25, 0
      %p193 = por %p191, %p192
      %p194 = scmp.ne.s32.totalorder %s182, %s183
      %p195 = scmp.eq.s32.totalorder %s26, 3
      %p196 = por %p194, %p195
      %p198 = scmp.ne.s32.totalorder %s183, %s197
      %p199 = scmp.eq.s32.totalorder %s26, 0
      %p200 = por %p198, %p199
      %s202 = sadd.s32 %s201, 1
      %p205 = scmp.eq.s32.totalorder %s20, 3
      %p206 = scmp.ne.s32.totalorder %s201, %s203
      %p207 = scmp.eq.s32.totalorder %s20, 0
      %p208 = por %p206, %p207
      %p209 = scmp.ne.s32.totalorder %s201, %s203
      %p210 = scmp.eq.s32.totalorder %s25, 3
      %p211 = por %p209, %p210
      %p212 = scmp.ne.s32.totalorder %s203, %s204
      %p213 = scmp.eq.s32.totalorder %s25, 0
      %p214 = por %p212, %p213
      %p215 = scmp.ne.s32.totalorder %s203, %s204
      %p216 = scmp.eq.s32.totalorder %s26, 3
      %p217 = por %p215, %p216
      %p219 = scmp.ne.s32.totalorder %s204, %s218
      %p220 = scmp.eq.s32.totalorder %s26, 0
      %p221 = por %p219, %p220
      %s222 = ssub.s32 %s27, %s39
      %s223 = ssub.s32 %s28, %s35
      %s224 = sor.u32 %s222, %s223
      %p225 = scmp.eq.s32.totalorder %s224, 0
      %s227 = sadd.s32 %s226, 1
      %s228 = scalar_select %p225, %s226, %s227
      %p231 = pneg %p225
      %p232 = scmp.eq.s32.totalorder %s20, 3
      %p233 = por %p231, %p232
      %p234 = scmp.ne.s32.totalorder %s226, %s229
      %p235 = scmp.eq.s32.totalorder %s20, 0
      %p236 = por %p234, %p235
      %p237 = scmp.ne.s32.totalorder %s226, %s229
      %p238 = scmp.eq.s32.totalorder %s25, 3
      %p239 = por %p237, %p238
      %p240 = scmp.ne.s32.totalorder %s229, %s230
      %p241 = scmp.eq.s32.totalorder %s25, 0
      %p242 = por %p240, %p241
      %p243 = scmp.ne.s32.totalorder %s229, %s230
      %p244 = scmp.eq.s32.totalorder %s26, 3
      %p245 = por %p243, %p244
      %p247 = scmp.ne.s32.totalorder %s230, %s246
      %p248 = scmp.eq.s32.totalorder %s26, 0
      %p249 = por %p247, %p248
      %p250 = scmp.le.s32.totalorder 1, %s20
      %p251 = scmp.lt.s32.totalorder %s20, 5
      %p252 = pnand %p250, %p251
      %p253 = pneg %p252
      // Predicated region
      $region9: #{tpu_custom_call.1} parent=5 // pred_check
        _
      $region10: #{tpu_custom_call.1} parent=5 // pred_check_branch
        %255 = sbr.rel (%p252) target = $region12
      $region11: #{tpu_custom_call.1} parent=5 // pred_region
        %s256 = ssub.s32 %s20, 1
        // Predicated region
        $region13: #{tpu_custom_call.1} parent=11 // pred_check
          %p257 = pneg %p109
        $region14: #{tpu_custom_call.1} parent=11 // pred_check_branch
          %259 = sbr.rel (%p257) target = $region16
        $region15: #{tpu_custom_call.1} parent=11 // pred_region
          _
        $region16: #{tpu_custom_call.1} parent=11 // pred_fallthru
          _
        // Predicated region
        $region17: #{tpu_custom_call.1} parent=11 // pred_check
          %p260 = pneg %p130
        $region18: #{tpu_custom_call.1} parent=11 // pred_check_branch
          %262 = sbr.rel (%p260) target = $region20
        $region19: #{tpu_custom_call.1} parent=11 // pred_region
          _
        $region20: #{tpu_custom_call.1} parent=11 // pred_fallthru
          _
        // Predicated region
        $region21: #{tpu_custom_call.1} parent=11 // pred_check
          %p263 = pneg %p151
        $region22: #{tpu_custom_call.1} parent=11 // pred_check_branch
          %265 = sbr.rel (%p263) target = $region24
        $region23: #{tpu_custom_call.1} parent=11 // pred_region
          _
        $region24: #{tpu_custom_call.1} parent=11 // pred_fallthru
          _
        // Predicated region
        $region25: #{tpu_custom_call.1} parent=11 // pred_check
          %p266 = pneg %p172
        $region26: #{tpu_custom_call.1} parent=11 // pred_check_branch
          %268 = sbr.rel (%p266) target = $region28
        $region27: #{tpu_custom_call.1} parent=11 // pred_region
          _
        $region28: #{tpu_custom_call.1} parent=11 // pred_fallthru
          _
        // Predicated region
        $region29: #{tpu_custom_call.1} parent=11 // pred_check
          %p269 = pneg %p193
        $region30: #{tpu_custom_call.1} parent=11 // pred_check_branch
          %271 = sbr.rel (%p269) target = $region32
        $region31: #{tpu_custom_call.1} parent=11 // pred_region
          _
        $region32: #{tpu_custom_call.1} parent=11 // pred_fallthru
          _
        // Predicated region
        $region33: #{tpu_custom_call.1} parent=11 // pred_check
          %p272 = pneg %p214
        $region34: #{tpu_custom_call.1} parent=11 // pred_check_branch
          %274 = sbr.rel (%p272) target = $region36
        $region35: #{tpu_custom_call.1} parent=11 // pred_region
          _
        $region36: #{tpu_custom_call.1} parent=11 // pred_fallthru
          _
      $region12: #{tpu_custom_call.1} parent=5 // pred_fallthru
        _
      %p275 = scmp.lt.s32.totalorder %s20, 4
      // Predicated region
      $region37: #{tpu_custom_call.1} parent=5 // pred_check
        %p276 = pneg %p275
      $region38: #{tpu_custom_call.1} parent=5 // pred_check_branch
        %278 = sbr.rel (%p276) target = $region40
      $region39: #{tpu_custom_call.1} parent=5 // pred_region
        // Predicated region
        $region41: #{tpu_custom_call.1} parent=39 // pred_check
          %p279 = pneg %p54
        $region42: #{tpu_custom_call.1} parent=39 // pred_check_branch
          %281 = sbr.rel (%p279) target = $region44
        $region43: #{tpu_custom_call.1} parent=39 // pred_region
          %s282 = sand.u32 %s44, 1
          %s283 = scalar_lea.sflag [#allocation3], %s282
          %s284 = sand.u32 %s44, 1
          %s285 = smul.addr %s284, 36
          %s286 = scalar_lea.vmem [#allocation2], %s285
          %s288 = ssub.s32 576, 576
          %289 = vsyncadd %s283, %s288
          %s290 = smul.addr %s27, 18
          %s291 = sadd.s32 %s28, %s290
          %s292 = smul.addr %s291, 64
          %s293 = scalar_lea.hbm %s0, %s292
          %s294 = sshll.u32 %s286, 4
          %s295 = int_to_ptr.vmem [resolvable:$true] %s294
          %300 = dma.hbm_to_vmem [thread:$0]  %s293, 576, %s295, %s283, 128, 64, 4
        $region44: #{tpu_custom_call.1} parent=39 // pred_fallthru
          _
        // Predicated region
        $region45: #{tpu_custom_call.1} parent=39 // pred_check
          %p301 = pneg %p82
        $region46: #{tpu_custom_call.1} parent=39 // pred_check_branch
          %303 = sbr.rel (%p301) target = $region48
        $region47: #{tpu_custom_call.1} parent=39 // pred_region
          %p304 = scmp.lt.s32.totalorder %s27, 1
          %s305 = scalar_select %p304, %s27, 1
          %p306 = scmp.lt.s32.totalorder %s28, 1
          %s307 = scalar_select %p306, %s28, 1
          %s308 = smul.addr %s305, 2
          %s309 = sadd.s32 %s307, %s308
          %s310 = smul.addr %s309, 4
          %s311 = scalar_lea.vmem %s1, %s310
        $region48: #{tpu_custom_call.1} parent=39 // pred_fallthru
          _
      $region40: #{tpu_custom_call.1} parent=5 // pred_fallthru
        _
      %p312 = scmp.le.s32.totalorder 1, %s20
      %p313 = scmp.lt.s32.totalorder %s20, 5
      %p314 = pnand %p312, %p313
      %p315 = pneg %p314
      // Predicated region
      $region49: #{tpu_custom_call.1} parent=5 // pred_check
        _
      $region50: #{tpu_custom_call.1} parent=5 // pred_check_branch
        %317 = sbr.rel (%p314) target = $region52
      $region51: #{tpu_custom_call.1} parent=5 // pred_region
        %s318 = ssub.s32 %s20, 1
        %s319 = sand.u32 %s47, 1
        %s320 = scalar_lea.sflag [#allocation3], %s319
        %s321 = sand.u32 %s47, 1
        %s322 = smul.addr %s321, 36
        %s323 = scalar_lea.vmem [#allocation2], %s322
        // Predicated region
        $region53: #{tpu_custom_call.1} parent=51 // pred_check
          %p324 = pneg %p60
        $region54: #{tpu_custom_call.1} parent=51 // pred_check_branch
          %326 = sbr.rel (%p324) target = $region56
        $region55: #{tpu_custom_call.1} parent=51 // pred_region
          %327 = dma.done %s320, 576
        $region56: #{tpu_custom_call.1} parent=51 // pred_fallthru
          _
        %s328 = sand.u32 %s47, 1
        %s329 = scalar_lea.sflag [#allocation3], %s328
        %s330 = sand.u32 %s47, 1
        %s331 = smul.addr %s330, 36
        %s332 = scalar_lea.vmem [#allocation2], %s331
        %p333 = pneg %p60
        %p334 = pneg %p57
        %p335 = scmp.lt.s32.totalorder %s29, 1
        %s336 = scalar_select %p335, %s29, 1
        %p337 = scmp.lt.s32.totalorder %s30, 1
        %s338 = scalar_select %p337, %s30, 1
        %s339 = smul.addr %s336, 2
        %s340 = sadd.s32 %s338, %s339
        %s341 = smul.addr %s340, 4
        %s342 = scalar_lea.vmem %s1, %s341
        %p343 = pneg %p88
        %p344 = pneg %p85
        %p345 = pneg %p109
        %p346 = pneg %p106
        %p347 = pneg %p130
        %p348 = pneg %p127
        %p349 = pneg %p151
        %p350 = pneg %p148
        %p351 = pneg %p172
        %p352 = pneg %p169
        %p353 = pneg %p193
        %p354 = pneg %p190
        %p355 = pneg %p214
        %p356 = pneg %p211
        %p357 = pneg %p242
        %p358 = pneg %p239
        %s359 = sand.u32 %s229, 1
        %s360 = scalar_lea.sflag [#allocation4], %s359
        %s361 = sand.u32 %s229, 1
        %s362 = smul.addr %s361, 16
        %s363 = scalar_lea.vmem [#allocation5], %s362
        %p364 = scmp.lt.s32.totalorder %s29, 1
        %s365 = scalar_select %p364, %s29, 1
        %p366 = scmp.lt.s32.totalorder %s30, 1
        %s367 = scalar_select %p366, %s30, 1
        %s368 = smul.addr %s365, 2
        %s369 = sadd.s32 %s367, %s368
        %s370 = smul.addr %s369, 4
        %s371 = scalar_lea.vmem %s1, %s370
        %v373 = vld [vmem:[%s323] sm:$0xf]
        %v374 = vld [vmem:[%s323 + $0x4] sm:$0xf]
        %v375 = vld [vmem:[%s323 + $0x8] sm:$0xf]
        %v376 = vld [vmem:[%s323 + $0xc] sm:$0xf]
        %v377 = vld [vmem:[%s323 + $0x10] sm:$0xf]
        %v378 = vld [vmem:[%s323 + $0x14] sm:$0xf]
        %v379 = vld [vmem:[%s323 + $0x18] sm:$0xf]
        %v380 = vld [vmem:[%s323 + $0x1c] sm:$0xf]
        %v381 = vld [vmem:[%s323 + $0x20] sm:$0xf]
        %v382 = vld [vmem:[%s371] sm:$0xf]
        %v383 = vld [vmem:[%s2] sm:$0xf]
        %v384 = vld [vmem:[%s5] sm:$0xff]
        %386 = vset.pattern.permute.xlu0 0
        %387 = vperm.xlu0 %386, %v384
        %v388 = vpop.permute.xlu0 %387
        %v399 = vunpack.c.l.b16 %v373
        %v400 = vunpack.c.l.b16 %v374
        %v401 = vunpack.c.l.b16 %v375
        %v402 = vunpack.c.l.b16 %v376
        %v403 = vunpack.c.l.b16 %v377
        %v404 = vunpack.c.l.b16 %v378
        %v405 = vunpack.c.l.b16 %v379
        %v406 = vunpack.c.l.b16 %v380
        %v407 = vunpack.c.l.b16 %v381
        %v408 = vpack.c.b16 %v400, %v399
        %v409 = vpack.c.b16 %v402, %v401
        %v410 = vpack.c.b16 %v404, %v403
        %v411 = vpack.c.b16 %v406, %v405
        %v412 = vpack.c.b16 %v407, %v407
        %vm417 = vcmask 588800
        %v419 = vsel %vm417, %v383, 0
        %vm421 = vcmask 1043456
        %v423 = vsel %vm421, %v412, 0
        %425 = vmatprep.subr.bf16.mxu0 0
        %426 = vmatpush1.bf16.msra.mxu0 0
        %427 = vmatprep.subr.bf16.mxu0 0
        %428 = vmatpush1.bf16.msra.mxu0 0
        %429 = vmatprep.subr.bf16.mxu0 0
        %430 = vmatpush1.bf16.msra.mxu0 0
        %431 = vmatprep.subr.bf16.mxu0 0
        %432 = vmatpush1.bf16.msra.mxu0 %v423
        %433 = vmatprep.subr.bf16.mxu0 0
        %434 = vmatpush1.bf16.msra.mxu0 %v411
        %435 = vmatprep.subr.bf16.mxu0 0
        %436 = vmatpush1.bf16.msra.mxu0 %v410
        %437 = vmatprep.subr.bf16.mxu0 0
        %438 = vmatpush1.bf16.msra.mxu0 %v409
        %439 = vmatprep.subr.bf16.mxu0 0
        %440 = vmatpush1.bf16.msra.mxu0 %v408
        %441 = vmatprep.subr.bf16.mxu0 0
        %442 = vmatpush2.bf16.msra.mxu0 0
        %443 = vmatprep.subr.bf16.mxu0 0
        %444 = vmatpush2.bf16.msra.mxu0 0
        %445 = vmatprep.subr.bf16.mxu0 0
        %446 = vmatpush2.bf16.msra.mxu0 0
        %447 = vmatprep.subr.bf16.mxu0 0
        %448 = vmatpush2.bf16.msra.mxu0 0
        %449 = vmatprep.subr.bf16.mxu0 0
        %450 = vmatpush2.bf16.msra.mxu0 0
        %451 = vmatprep.subr.bf16.mxu0 0
        %452 = vmatpush2.bf16.msra.mxu0 0
        %453 = vmatprep.subr.bf16.mxu0 0
        %454 = vmatpush2.bf16.msra.mxu0 0
        %455 = vmatprep.subr.bf16.mxu0 0
        %456 = vmatpush2.bf16.msra.mxu0 0
        %457 = vmatprep.mubr.bf16.mxu0 0
        %458 = vmatmul.mubr.bf16.gmra.mxu0 %v419
        %v459 = vpop.f32.mrf.mxu0
        %v460 = vadd.f32 %v388, %v459
        %v461 = vpop.f32.mrf.mxu0
        %v462 = vpop.f32.mrf.mxu0
        %v463 = vpop.f32.mrf.mxu0
        %464 = vdwg.mxu0
        %v465 = vmax.f32 %v460, 0.0
        %v466 = vpack.c.bf16 %v465, %v465
        %v467 = vld [vmem:[%s4] sm:$0xf]
        %v468 = vld [vmem:[%s4 + $0x4] sm:$0xf]
        %v469 = vld [vmem:[%s7] sm:$0xff]
        %v470 = vld [vmem:[%s7 + $0x8] sm:$0xff]
        %472 = vset.pattern.permute.xlu0 0
        %473 = vperm.xlu0 %472, %v469
        %v474 = vpop.permute.xlu0 %473
        %477 = vset.pattern.permute.xlu0 0
        %478 = vperm.xlu0 %477, %v470
        %v479 = vpop.permute.xlu0 %478
        %v483 = vunpack.c.l.b16 %v467
        %v484 = vunpack.c.l.b16 %v468
        %v485 = vpack.c.b16 %v484, %v483
        %vm486 = vcmask 64512
        %v488 = vsel %vm486, %v485, 0
        %v491 = vsel %vm421, %v382, 0
        %493 = vmatprep.subr.bf16.mxu0 0
        %494 = vmatpush1.bf16.msra.mxu0 0
        %495 = vmatprep.subr.bf16.mxu0 0
        %496 = vmatpush1.bf16.msra.mxu0 0
        %497 = vmatprep.subr.bf16.mxu0 0
        %498 = vmatpush1.bf16.msra.mxu0 0
        %499 = vmatprep.subr.bf16.mxu0 0
        %500 = vmatpush1.bf16.msra.mxu0 0
        %501 = vmatprep.subr.bf16.mxu0 0
        %502 = vmatpush1.bf16.msra.mxu0 0
        %503 = vmatprep.subr.bf16.mxu0 0
        %504 = vmatpush1.bf16.msra.mxu0 0
        %505 = vmatprep.subr.bf16.mxu0 0
        %506 = vmatpush1.bf16.msra.mxu0 0
        %507 = vmatprep.subr.bf16.mxu0 0
        %508 = vmatpush1.bf16.msra.mxu0 %v491
        %509 = vmatprep.subr.bf16.mxu0 0
        %510 = vmatpush2.bf16.msra.mxu0 0
        %511 = vmatprep.subr.bf16.mxu0 0
        %512 = vmatpush2.bf16.msra.mxu0 0
        %513 = vmatprep.subr.bf16.mxu0 0
        %514 = vmatpush2.bf16.msra.mxu0 0
        %515 = vmatprep.subr.bf16.mxu0 0
        %516 = vmatpush2.bf16.msra.mxu0 0
        %517 = vmatprep.subr.bf16.mxu0 0
        %518 = vmatpush2.bf16.msra.mxu0 0
        %519 = vmatprep.subr.bf16.mxu0 0
        %520 = vmatpush2.bf16.msra.mxu0 0
        %521 = vmatprep.subr.bf16.mxu0 0
        %522 = vmatpush2.bf16.msra.mxu0 0
        %523 = vmatprep.subr.bf16.mxu0 0
        %524 = vmatpush2.bf16.msra.mxu0 0
        %525 = vmatprep.mubr.bf16.mxu0 0
        %526 = vmatmul.mubr.bf16.gmra.mxu0 %v488
        %v527 = vpop.f32.mrf.mxu0
        %v528 = vadd.f32 %v474, %v527
        %v529 = vpop.f32.mrf.mxu0
        %v530 = vpop.f32.mrf.mxu0
        %v531 = vadd.f32 %v479, %v530
        %v532 = vpop.f32.mrf.mxu0
        %533 = vdwg.mxu0
        %v534 = vmax.f32 %v528, 0.0
        %v535 = vmax.f32 %v531, 0.0
        %v536 = vld [vmem:[%s3] sm:$0xf]
        %v537 = vld [vmem:[%s3 + $0x4] sm:$0xf]
        %v538 = vld [vmem:[%s6] sm:$0xff]
        %v539 = vld [vmem:[%s6 + $0x8] sm:$0xff]
        %541 = vset.pattern.permute.xlu0 0
        %542 = vperm.xlu0 %541, %v538
        %v543 = vpop.permute.xlu0 %542
        %546 = vset.pattern.permute.xlu0 0
        %547 = vperm.xlu0 %546, %v539
        %v548 = vpop.permute.xlu0 %547
        %v552 = vunpack.c.l.b16 %v536
        %v553 = vunpack.c.l.b16 %v537
        %v554 = vpack.c.b16 %v553, %v552
        %v556 = vsel %vm486, %v554, 0
        %v559 = vsel %vm421, %v466, 0
        %561 = vmatprep.subr.bf16.mxu0 0
        %562 = vmatpush1.bf16.msra.mxu0 0
        %563 = vmatprep.subr.bf16.mxu0 0
        %564 = vmatpush1.bf16.msra.mxu0 0
        %565 = vmatprep.subr.bf16.mxu0 0
        %566 = vmatpush1.bf16.msra.mxu0 0
        %567 = vmatprep.subr.bf16.mxu0 0
        %568 = vmatpush1.bf16.msra.mxu0 0
        %569 = vmatprep.subr.bf16.mxu0 0
        %570 = vmatpush1.bf16.msra.mxu0 0
        %571 = vmatprep.subr.bf16.mxu0 0
        %572 = vmatpush1.bf16.msra.mxu0 0
        %573 = vmatprep.subr.bf16.mxu0 0
        %574 = vmatpush1.bf16.msra.mxu0 0
        %575 = vmatprep.subr.bf16.mxu0 0
        %576 = vmatpush1.bf16.msra.mxu0 %v559
        %577 = vmatprep.subr.bf16.mxu0 0
        %578 = vmatpush2.bf16.msra.mxu0 0
        %579 = vmatprep.subr.bf16.mxu0 0
        %580 = vmatpush2.bf16.msra.mxu0 0
        %581 = vmatprep.subr.bf16.mxu0 0
        %582 = vmatpush2.bf16.msra.mxu0 0
        %583 = vmatprep.subr.bf16.mxu0 0
        %584 = vmatpush2.bf16.msra.mxu0 0
        %585 = vmatprep.subr.bf16.mxu0 0
        %586 = vmatpush2.bf16.msra.mxu0 0
        %587 = vmatprep.subr.bf16.mxu0 0
        %588 = vmatpush2.bf16.msra.mxu0 0
        %589 = vmatprep.subr.bf16.mxu0 0
        %590 = vmatpush2.bf16.msra.mxu0 0
        %591 = vmatprep.subr.bf16.mxu0 0
        %592 = vmatpush2.bf16.msra.mxu0 0
        %593 = vmatprep.mubr.bf16.mxu0 0
        %594 = vmatmul.mubr.bf16.gmra.mxu0 %v556
        %v595 = vpop.f32.mrf.mxu0
        %v596 = vadd.f32 %v543, %v595
        %v597 = vpop.f32.mrf.mxu0
        %v598 = vpop.f32.mrf.mxu0
        %v599 = vadd.f32 %v548, %v598
        %v600 = vpop.f32.mrf.mxu0
        %601 = vdwg.mxu0
        %v602 = vmax.f32 %v596, 0.0
        %v603 = vmax.f32 %v599, 0.0
        %v604 = vadd.f32 %v602, %v534
        %v605 = vadd.f32 %v603, %v535
        %v606 = vmax.f32 %v604, 0.0
        %v607 = vmax.f32 %v605, 0.0
        %608 = vst [vmem:[%s363] sm:$0xff] %v606
        %609 = vst [vmem:[%s363 + $0x8] sm:$0xff] %v607
        %s610 = sand.u32 %s229, 1
        %s611 = scalar_lea.sflag [#allocation4], %s610
        %s612 = sand.u32 %s229, 1
        %s613 = smul.addr %s612, 16
        %s614 = scalar_lea.vmem [#allocation5], %s613
        // Predicated region
        $region57: #{tpu_custom_call.1} parent=51 // pred_check
          %p615 = pneg %p239
        $region58: #{tpu_custom_call.1} parent=51 // pred_check_branch
          %617 = sbr.rel (%p615) target = $region60
        $region59: #{tpu_custom_call.1} parent=51 // pred_region
          %s619 = ssub.s32 256, 256
          %620 = vsyncadd %s611, %s619
          %s621 = smul.addr %s29, 4
          %s622 = sadd.s32 %s30, %s621
          %s623 = smul.addr %s622, 128
          %s624 = scalar_lea.hbm %s8, %s623
          %s625 = sshll.u32 %s614, 4
          %s626 = int_to_ptr.vmem [resolvable:$true] %s625
          %631 = dma.vmem_to_hbm [thread:$0]  %s626, 256, %s624, %s611, 128, 256, 8
        $region60: #{tpu_custom_call.1} parent=51 // pred_fallthru
          _
      $region52: #{tpu_custom_call.1} parent=5 // pred_fallthru
        _
      %p632 = scmp.le.s32.totalorder 2, %s20
      // Predicated region
      $region61: #{tpu_custom_call.1} parent=5 // pred_check
        %p633 = pneg %p632
      $region62: #{tpu_custom_call.1} parent=5 // pred_check_branch
        %635 = sbr.rel (%p633) target = $region64
      $region63: #{tpu_custom_call.1} parent=5 // pred_region
        %s636 = ssub.s32 %s20, 2
        // Predicated region
        $region65: #{tpu_custom_call.1} parent=63 // pred_check
          %p637 = pneg %p245
        $region66: #{tpu_custom_call.1} parent=63 // pred_check_branch
          %639 = sbr.rel (%p637) target = $region68
        $region67: #{tpu_custom_call.1} parent=63 // pred_region
          %s640 = sand.u32 %s230, 1
          %s641 = scalar_lea.sflag [#allocation4], %s640
          %s642 = sand.u32 %s230, 1
          %s643 = smul.addr %s642, 16
          %s644 = scalar_lea.vmem [#allocation5], %s643
          %645 = dma.done %s641, 256
        $region68: #{tpu_custom_call.1} parent=63 // pred_fallthru
          _
      $region64: #{tpu_custom_call.1} parent=5 // pred_fallthru
        _
    $region6: #{tpu_custom_call.1} parent=1 // loop_footer
      %s24 = sadd.s32 1, %s20
    $region7: #{tpu_custom_call.1} parent=1 // loop_footer_branch
      %19 = sbr.rel target = $region3
    $region8: #{tpu_custom_call.1} parent=1 // loop_exit
      _
    %646 = vsyncpa [#allocation3], 1
    %s647 = scalar_lea.sflag [#allocation3], 1
    %648 = vsyncpa %s647, 1
    %649 = vsyncpa [#allocation4], 1
    %s650 = scalar_lea.sflag [#allocation4], 1
    %651 = vsyncpa %s650, 1

</llo_original>
